<compile_context>
chip_gen: v6e
topology: v6e:2x2x1
jax: 0.10.0
libtpu: 0.0.40
codegen_flags: <defaults>
</compile_context>

<pallas_src>
import functools
import math

import jax
import jax.numpy as jnp
from jax.experimental import pallas as pl
from jax.experimental.pallas import tpu as pltpu


def _round_up(x, m):
    return ((x + m - 1) // m) * m


def _vmem_capacity_bytes():
    try:
        return int(pltpu.get_tpu_info().vmem_capacity_bytes)
    except Exception:
        return 64 * 1024 * 1024  # conservative (v7x per-core VMEM)


# ----------------------------------------------------------------------------
# Glue: build the (transposed, pre-padded) Radon projection matrix in JAX.
# ----------------------------------------------------------------------------
def build_projection_matrix_t(size, thetas, positions, k_pad=None, r_pad=None,
                              dtype=jnp.float32):
    """Returns At with shape (k_pad, r_pad).

    At[i*size + j, a*P + p] = bilinear line-integral weight of pixel (i, j)
    for the ray at angle thetas[a] and signed perpendicular offset
    positions[p].  Rows >= size*size and columns >= A*P are zero padding so
    the matmul kernel needs no extra pad copies of the matrix.  Uses a 2-D
    scatter (row, col) so indices never form a k_pad*r_pad flat int32 value.
    """
    n_theta = int(thetas.shape[0])
    n_pos = int(positions.shape[0])
    n_rays = n_theta * n_pos
    n_pix = size * size
    k_pad = n_pix if k_pad is None else k_pad
    r_pad = n_rays if r_pad is None else r_pad
    assert k_pad >= n_pix and r_pad >= n_rays

    c = (size - 1) / 2.0
    # samples along the ray, unit step, long enough to cross the diagonal
    nt = int(math.ceil(size * math.sqrt(2.0))) + 1
    t = jnp.arange(nt, dtype=jnp.float32) - (nt - 1) / 2.0

    cos = jnp.cos(thetas.astype(jnp.float32))
    sin = jnp.sin(thetas.astype(jnp.float32))
    pos = positions.astype(jnp.float32)

    # sample coordinates, shape (n_theta, n_pos, nt)
    x = pos[None, :, None] * cos[:, None, None] - t[None, None, :] * sin[:, None, None]
    y = pos[None, :, None] * sin[:, None, None] + t[None, None, :] * cos[:, None, None]
    col = x + c
    row = y + c

    j0 = jnp.floor(col).astype(jnp.int32)
    i0 = jnp.floor(row).astype(jnp.int32)
    fc = col - j0.astype(jnp.float32)
    fr = row - i0.astype(jnp.float32)

    ray_idx = (jnp.arange(n_theta)[:, None] * n_pos + jnp.arange(n_pos)[None, :])
    ray_idx = jnp.broadcast_to(ray_idx[:, :, None], (n_theta, n_pos, nt)).reshape(-1)

    at = jnp.zeros((k_pad, r_pad), dtype=jnp.float32)

    def add_corner(buf, ii, jj, w):
        valid = (ii >= 0) & (ii < size) & (jj >= 0) & (jj < size)
        ii_c = jnp.clip(ii, 0, size - 1)
        jj_c = jnp.clip(jj, 0, size - 1)
        pix = (ii_c * size + jj_c).reshape(-1)            # < size*size: int32-safe
        w = jnp.where(valid, w, 0.0).reshape(-1)
        return buf.at[pix, ray_idx].add(w)

    at = add_corner(at, i0,     j0,     (1.0 - fr) * (1.0 - fc))
    at = add_corner(at, i0,     j0 + 1, (1.0 - fr) * fc)
    at = add_corner(at, i0 + 1, j0,     fr * (1.0 - fc))
    at = add_corner(at, i0 + 1, j0 + 1, fr * fc)

    return at.astype(dtype)


# ----------------------------------------------------------------------------
# Pallas kernels: out[Mp, Rp] = x[Mp, Kp] @ At[Kp, Rp], x resident in VMEM.
# ----------------------------------------------------------------------------
def _dot_f32(x_blk, a_blk):
    # Mixed-precision operands (f32 image, bf16 weights): cast in VMEM and
    # accumulate in f32.  HBM traffic (the bf16 A^T stream) is unaffected.
    if x_blk.dtype != a_blk.dtype:
        x_blk = x_blk.astype(jnp.float32)
        a_blk = a_blk.astype(jnp.float32)
    return jnp.dot(x_blk, a_blk, preferred_element_type=jnp.float32)


def _radon_matmul_kernel_single(x_ref, at_ref, o_ref):
    # Single reduction step: no accumulator scratch needed.
    o_ref[...] = _dot_f32(x_ref[...], at_ref[...]).astype(o_ref.dtype)


def _radon_matmul_kernel_acc(x_ref, at_ref, o_ref, acc_ref, *, tk):
    k = pl.program_id(2)

    @pl.when(k == 0)
    def _():
        acc_ref[...] = jnp.zeros_like(acc_ref)

    k_off = pl.multiple_of(k * tk, tk)
    acc_ref[...] += _dot_f32(x_ref[:, pl.ds(k_off, tk)], at_ref[...])

    @pl.when(k == pl.num_programs(2) - 1)
    def _():
        o_ref[...] = acc_ref[...].astype(o_ref.dtype)


def _pallas_radon_matmul(x_pad, at_pad, *, tm, tn, tk, vmem_limit_bytes, cost):
    mp, kp = x_pad.shape
    kp2, rp = at_pad.shape
    assert kp == kp2 and mp % tm == 0 and rp % tn == 0 and kp % tk == 0

    out_shape = jax.ShapeDtypeStruct((mp, rp), x_pad.dtype)

    if kp == tk:
        # Single reduction step: 2-D grid, no accumulator scratch.
        grid_spec = pltpu.PrefetchScalarGridSpec(
            num_scalar_prefetch=0,
            grid=(mp // tm, rp // tn),
            in_specs=[
                # x slab: block index depends only on i -> resident across j.
                pl.BlockSpec((tm, kp), lambda i, j: (i, 0)),
                # Projection-matrix tiles are the only streamed operand.
                pl.BlockSpec((tk, tn), lambda i, j: (0, j)),
            ],
            out_specs=pl.BlockSpec((tm, tn), lambda i, j: (i, j)),
        )
        kernel = _radon_matmul_kernel_single
        semantics = ("parallel", "parallel")
    else:
        grid_spec = pltpu.PrefetchScalarGridSpec(
            num_scalar_prefetch=0,
            grid=(mp // tm, rp // tn, kp // tk),
            in_specs=[
                # x slab resident across the whole (j, k) sweep; with a single
                # i-tile the v7x megacore split lands on j, partitioning the
                # dominant A^T HBM stream instead of duplicating it.
                pl.BlockSpec((tm, kp), lambda i, j, k: (i, 0)),
                pl.BlockSpec((tk, tn), lambda i, j, k: (k, j)),
            ],
            out_specs=pl.BlockSpec((tm, tn), lambda i, j, k: (i, j)),
            scratch_shapes=[pltpu.VMEM((tm, tn), jnp.float32)],
        )
        kernel = functools.partial(_radon_matmul_kernel_acc, tk=tk)
        semantics = ("parallel", "parallel", "arbitrary")

    return pl.pallas_call(
        kernel,
        out_shape=out_shape,
        grid_spec=grid_spec,
        compiler_params=pltpu.CompilerParams(
            dimension_semantics=semantics,
            vmem_limit_bytes=vmem_limit_bytes,
        ),
        cost_estimate=cost,
    )(x_pad, at_pad)


# ----------------------------------------------------------------------------
# Generation-aware tile selection.
# ----------------------------------------------------------------------------
def _choose_tiles(m, k, r, x_itemsize, w_itemsize, out_itemsize, vmem_capacity):
    budget = int(0.70 * vmem_capacity)   # never claim full physical VMEM (v7x!)
    # sublane packing of the output/image dtype: f32 -> 8, bf16 -> 16, int8 -> 32
    pack = 8 * max(1, 4 // max(out_itemsize, 1))

    # --- K (reduction) tiling: minimize zero-padding of the streamed A^T.
    kp128 = _round_up(k, 128)
    if kp128 <= 2048:
        tk = kp128
    else:
        tk = min((2048, 1024, 512), key=lambda c: (_round_up(k, c) - k, -c))
    kp = _round_up(k, tk)

    # --- R tiling: lane-dense output, minimal column padding of A^T.
    def pick_tn(cands):
        return min(cands, key=lambda c: (_round_up(r, c) - r, -c))

    tn = pick_tn((512, 384, 256, 128))

    # --- M: keep the whole image slab resident (single i-tile) when it fits
    #     the per-generation budget, so A^T streams from HBM exactly once.
    def x_slab(t):
        return 2 * t * kp * x_itemsize   # pipeline double-buffers the block

    tm = _round_up(m, pack)
    if x_slab(tm) > budget // 2:
        tm = max(pack, ((budget // 2) // (2 * kp * x_itemsize)) // pack * pack)

    def est(tm_, tn_, tk_):
        acc = tm_ * tn_ * 4 if kp > tk_ else 0
        conv = tk_ * tn_ * 4               # in-VMEM f32 staging of the A tile
        return (x_slab(tm_) + 2 * tk_ * tn_ * w_itemsize
                + 2 * tm_ * tn_ * out_itemsize + acc + conv)

    # Shrink until the estimate fits the scoped-VMEM budget.
    while est(tm, tn, tk) > budget:
        if tk > 512 and kp % (tk // 2) == 0:
            tk //= 2
        elif tn > 128:
            tn = pick_tn(tuple(c for c in (384, 256, 128) if c < tn))
        elif tm > pack:
            tm = max(pack, ((tm // 2) // pack) * pack)
        else:
            break

    mp = _round_up(m, tm)
    rp = _round_up(r, tn)
    return tm, tn, tk, mp, kp, rp, est(tm, tn, tk)


# ----------------------------------------------------------------------------
# Module-equivalent wrapper
# ----------------------------------------------------------------------------
class RadonForward:
    """JAX/Pallas equivalent of the PyTorch RadonForward module (forward only).

    thetas / positions are fixed (non-trainable); defaults mirror the usual
    radon_forward defaults (angles over [0, pi), one detector position per
    pixel spanning the image width).  The projection matrix is memoized per
    configuration so repeated forwards only run the Pallas matmul.
    """

    def __init__(self, thetas=None, positions=None, weight_dtype=jnp.bfloat16):
        self.thetas = thetas
        self.positions = positions
        self.weight_dtype = jnp.dtype(weight_dtype)
        self._at_cache = {}

    def _angles(self, size):
        thetas = (self.thetas if self.thetas is not None
                  else jnp.linspace(0.0, jnp.pi, size, endpoint=False))
        positions = (self.positions if self.positions is not None
                     else jnp.arange(size, dtype=jnp.float32) - (size - 1) / 2.0)
        return thetas, positions

    def __call__(self, x):
        n, c, h, w = x.shape
        assert h == w, "Radon forward expects square images"
        size = h
        thetas, positions = self._angles(size)
        n_t = int(thetas.shape[0])
        n_p = int(positions.shape[0])
        m = n * c
        k = size * size
        r = n_t * n_p

        x_itemsize = jnp.dtype(x.dtype).itemsize
        out_itemsize = x_itemsize
        w_itemsize = self.weight_dtype.itemsize
        vmem_cap = _vmem_capacity_bytes()

        tm, tn, tk, mp, kp, rp, need = _choose_tiles(
            m, k, r, x_itemsize, w_itemsize, out_itemsize, vmem_cap)

        cache_key = (size, n_t, n_p, kp, rp, str(self.weight_dtype))
        at_pad = self._at_cache.get(cache_key)
        if at_pad is None:
            at_pad = build_projection_matrix_t(
                size, thetas, positions, k_pad=kp, r_pad=rp,
                dtype=self.weight_dtype)
            self._at_cache[cache_key] = at_pad

        x_flat = x.reshape(m, k)
        if mp != m or kp != k:
            x_flat = jnp.pad(x_flat, ((0, mp - m), (0, kp - k)))

        budget = int(0.70 * vmem_cap)
        vmem_limit = int(min(budget, max(int(need * 1.5), 16 * 1024 * 1024)))

        cost = pl.CostEstimate(
            flops=int(2 * mp * kp * rp),
            transcendentals=0,
            bytes_accessed=int(kp * rp * w_itemsize + mp * kp * x_itemsize
                               + mp * rp * out_itemsize),
        )

        out = _pallas_radon_matmul(
            x_flat, at_pad, tm=tm, tn=tn, tk=tk,
            vmem_limit_bytes=vmem_limit, cost=cost)
        return out[:m, :r].reshape(n, c, n_t, n_p)


# ----------------------------------------------------------------------------
# Reference (plain XLA) with the same bf16-quantized weights for comparison.
# ----------------------------------------------------------------------------
def radon_reference(x, thetas, positions, weight_dtype=jnp.float32):
    n, c, h, _ = x.shape
    size = h
    at = build_projection_matrix_t(size, thetas, positions, dtype=weight_dtype)
    sino = jnp.dot(x.reshape(n * c, size * size), at.astype(jnp.float32),
                   precision=jax.lax.Precision.HIGHEST)
    return sino.reshape(n, c, int(thetas.shape[0]), int(positions.shape[0]))


if __name__ == "__main__":
    key = jax.random.PRNGKey(0)
    k1, k2 = jax.random.split(key)

    # --- Test 1: explicit thetas/positions, single-reduction-step kernel path.
    N, C, S = 2, 4, 16
    x1 = jax.random.normal(k1, (N, C, S, S), dtype=jnp.float32)
    n_thetas = 8
    thetas = jnp.linspace(0.0, jnp.pi, n_thetas, endpoint=False)
    positions = jnp.arange(S, dtype=jnp.float32) - (S - 1) / 2.0

    radon1 = RadonForward(thetas=thetas, positions=positions)
    sino1 = jax.block_until_ready(radon1(x1))
    assert sino1.shape == (N, C, n_thetas, S)

    ref1 = radon_reference(x1, thetas, positions, weight_dtype=jnp.bfloat16)
    err1 = float(jnp.max(jnp.abs(sino1 - ref1)) / (jnp.max(jnp.abs(ref1)) + 1e-6))
    assert err1 < 2e-2, f"test1 relative error too large: {err1}"

    # --- Test 2: default thetas/positions at size 48 -> multi j/k tiles,
    #     exercising the K>tk accumulation path and K/R padding.
    N2, C2, S2 = 2, 3, 48
    x2 = jax.random.normal(k2, (N2, C2, S2, S2), dtype=jnp.float32)
    radon2 = RadonForward()
    sino2 = jax.block_until_ready(radon2(x2))
    assert sino2.shape == (N2, C2, S2, S2)

    th2 = jnp.linspace(0.0, jnp.pi, S2, endpoint=False)
    po2 = jnp.arange(S2, dtype=jnp.float32) - (S2 - 1) / 2.0
    ref2 = radon_reference(x2, th2, po2, weight_dtype=jnp.bfloat16)
    err2 = float(jnp.max(jnp.abs(sino2 - ref2)) / (jnp.max(jnp.abs(ref2)) + 1e-6))
    assert err2 < 2e-2, f"test2 relative error too large: {err2}"

    print("KERNEL_OK")
</pallas_src>

<mosaic_0001>
module attributes {stable_mosaic.version = 11 : i64} {
  func.func @_radon_matmul_kernel_single(%arg0: i32, %arg1: i32, %arg2: memref<8x256xf32, #tpu.memory_space<vmem>>, %arg3: memref<256x128xbf16, #tpu.memory_space<vmem>>, %arg4: memref<8x128xf32, #tpu.memory_space<vmem>>) attributes {dimension_semantics = [#tpu.dimension_semantics<parallel>, #tpu.dimension_semantics<parallel>], iteration_bounds = array<i64: 1, 1>, scalar_prefetch = 0 : i64, scratch_operands = 0 : i64, tpu.core_type = #tpu.core_type<tc>, window_params = [{transform_indices = @transform_0, window_bounds = array<i64: 8, 256>}, {transform_indices = @transform_1, window_bounds = array<i64: 256, 128>}, {transform_indices = @transform_2, window_bounds = array<i64: 8, 128>}]} {
    %c0 = arith.constant 0 : index
    %c0_0 = arith.constant 0 : index
    %0 = vector.load %arg2[%c0, %c0_0] : memref<8x256xf32, #tpu.memory_space<vmem>>, vector<8x256xf32>
    %c0_1 = arith.constant 0 : index
    %c0_2 = arith.constant 0 : index
    %1 = vector.load %arg3[%c0_1, %c0_2] : memref<256x128xbf16, #tpu.memory_space<vmem>>, vector<256x128xbf16>
    %2 = arith.extf %1 : vector<256x128xbf16> to vector<256x128xf32>
    %cst = arith.constant dense<0.000000e+00> : vector<8x128xf32>
    %3 = tpu.matmul %0, %2, %cst {dimension_numbers = #tpu.dot_dimension_numbers<[1], [0], [0], [1], [0, 0, 1, 1], [], []>} : vector<8x256xf32>, vector<256x128xf32>, vector<8x128xf32> -> vector<8x128xf32>
    %c0_3 = arith.constant 0 : index
    %c0_4 = arith.constant 0 : index
    %4 = vector.load %arg4[%c0_3, %c0_4] : memref<8x128xf32, #tpu.memory_space<vmem>>, vector<8x128xf32>
    tpu.vector_store %arg4[%c0_3, %c0_4], %3 {strides = array<i32>} : memref<8x128xf32, #tpu.memory_space<vmem>>, vector<8x128xf32>,
    return
  }
  func.func @transform_0(%arg0: i32, %arg1: i32) -> (i32, i32) {
    %c0_i32 = arith.constant 0 : i32
    %c0_i32_0 = arith.constant 0 : i32
    return %arg0, %c0_i32 : i32, i32
  }
  func.func @transform_1(%arg0: i32, %arg1: i32) -> (i32, i32) {
    %c0_i32 = arith.constant 0 : i32
    %c0_i32_0 = arith.constant 0 : i32
    return %c0_i32, %arg1 : i32, i32
  }
  func.func @transform_2(%arg0: i32, %arg1: i32) -> (i32, i32) {
    %c0_i32 = arith.constant 0 : i32
    return %arg0, %arg1 : i32, i32
  }
}

</mosaic_0001>

<llo_original>
// kernel: tpu_custom_call.1
$region0: #{tpu_custom_call.1}
  #allocation0 [shape = 'u32[]', space=smem, size = 0x4, offset = 0x4, fixed_abs, tag = 'smem constant byte address 0x4 - core index']
  #allocation1 [shape = 'u32[144,128]{1,0:T(1,128)}', space=vmem, size = 0x12000, scoped, tag = 'internal scratch']
  %s0 = inlined_call_operand.hbm [shape: f32[8,256], index: 0, kind: input, shape index: {}]
  %s1 = inlined_call_operand.hbm [shape: bf16[256,128], index: 1, kind: input, shape index: {}]
  %s2 = inlined_call_operand.hbm [shape: f32[8,128], index: 2, kind: output, shape index: {}]
  %s3 = sld [smem:[#allocation0]]
  $region26: #{tpu_custom_call.1} parent=0
    _
  %s5 = ssub.s32 1, %s3
  %s6 = scalar_select 0, %s5, %s3
  $region1: #{tpu_custom_call.1} parent=0
    #allocation2 [shape = 'u8[8192]{0}', space=vmem, size = 0x2000, scoped, tag = 'input window, operand 0, single buffered']
    #allocation3 [shape = 's32[1]{0}', space=sflag, size = 0x4, scoped, tag = 'scoped memory for tpu_custom_call.1']
    #allocation4 [shape = 's32[1]{0}', space=sflag, size = 0x4, scoped, tag = 'scoped memory for tpu_custom_call.1']
    #allocation5 [shape = 'u8[65536]{0}', space=vmem, size = 0x10000, scoped, tag = 'input window, operand 1, single buffered']
    #allocation6 [shape = 's32[1]{0}', space=sflag, size = 0x4, scoped, tag = 'scoped memory for tpu_custom_call.1']
    #allocation7 [shape = 'u8[4096]{0}', space=vmem, size = 0x1000, scoped, tag = 'output window, operand 0, single buffered']
    %7 = vsyncpa [#allocation3], 0
    %8 = vsyncpa [#allocation6], 0
    %9 = vsyncpa [#allocation4], 0
    // Predicated region
    $region2: #{tpu_custom_call.1} parent=1 // pred_check
      _
    $region3: #{tpu_custom_call.1} parent=1 // pred_check_branch
      %11 = sbr.rel (0) target = $region5
    $region4: #{tpu_custom_call.1} parent=1 // pred_region
      %s13 = ssub.s32 256, 256
      %14 = vsyncadd [#allocation3], %s13
      %s16 = sshll.u32 [#allocation2], 4
      %s17 = int_to_ptr.vmem [resolvable:$true] %s16
      %19 = dma.hbm_to_vmem [thread:$0]  %s0, 256, %s17, [#allocation3]
    $region5: #{tpu_custom_call.1} parent=1 // pred_fallthru
      _
    // Predicated region
    $region6: #{tpu_custom_call.1} parent=1 // pred_check
      _
    $region7: #{tpu_custom_call.1} parent=1 // pred_check_branch
      %21 = sbr.rel (0) target = $region9
    $region8: #{tpu_custom_call.1} parent=1 // pred_region
      %s23 = ssub.s32 2048, 2048
      %24 = vsyncadd [#allocation6], %s23
      %s25 = sshll.u32 [#allocation5], 4
      %s26 = int_to_ptr.vmem [resolvable:$true] %s25
      %31 = dma.hbm_to_vmem [thread:$0]  %s1, 2048, %s26, [#allocation6], 64, 64, 4
    $region9: #{tpu_custom_call.1} parent=1 // pred_fallthru
      _
    // Predicated region
    $region10: #{tpu_custom_call.1} parent=1 // pred_check
      _
    $region11: #{tpu_custom_call.1} parent=1 // pred_check_branch
      %33 = sbr.rel (0) target = $region13
    $region12: #{tpu_custom_call.1} parent=1 // pred_region
      %34 = dma.done [#allocation3], 256
    $region13: #{tpu_custom_call.1} parent=1 // pred_fallthru
      _
    // Predicated region
    $region14: #{tpu_custom_call.1} parent=1 // pred_check
      _
    $region15: #{tpu_custom_call.1} parent=1 // pred_check_branch
      %36 = sbr.rel (0) target = $region17
    $region16: #{tpu_custom_call.1} parent=1 // pred_region
      %37 = dma.done [#allocation6], 2048
    $region17: #{tpu_custom_call.1} parent=1 // pred_fallthru
      _
    %v38 = vld [vmem:[#allocation2] sm:$0xff]
    %v39 = vld [vmem:[#allocation2 + $0x8] sm:$0xff]
    %v40 = vld [vmem:[#allocation5] sm:$0xf]
    %v41 = vld [vmem:[#allocation5 + $0x4] sm:$0xf]
    %v42 = vld [vmem:[#allocation5 + $0x8] sm:$0xf]
    %v43 = vld [vmem:[#allocation5 + $0xc] sm:$0xf]
    %v44 = vld [vmem:[#allocation5 + $0x10] sm:$0xf]
    %v45 = vld [vmem:[#allocation5 + $0x14] sm:$0xf]
    %v46 = vld [vmem:[#allocation5 + $0x18] sm:$0xf]
    %v47 = vld [vmem:[#allocation5 + $0x1c] sm:$0xf]
    %v48 = vld [vmem:[#allocation5 + $0x20] sm:$0xf]
    %v49 = vld [vmem:[#allocation5 + $0x24] sm:$0xf]
    %v50 = vld [vmem:[#allocation5 + $0x28] sm:$0xf]
    %v51 = vld [vmem:[#allocation5 + $0x2c] sm:$0xf]
    %v52 = vld [vmem:[#allocation5 + $0x30] sm:$0xf]
    %v53 = vld [vmem:[#allocation5 + $0x34] sm:$0xf]
    %v54 = vld [vmem:[#allocation5 + $0x38] sm:$0xf]
    %v55 = vld [vmem:[#allocation5 + $0x3c] sm:$0xf]
    %v56 = vld [vmem:[#allocation5 + $0x40] sm:$0xf]
    %v57 = vld [vmem:[#allocation5 + $0x44] sm:$0xf]
    %v58 = vld [vmem:[#allocation5 + $0x48] sm:$0xf]
    %v59 = vld [vmem:[#allocation5 + $0x4c] sm:$0xf]
    %v60 = vld [vmem:[#allocation5 + $0x50] sm:$0xf]
    %v61 = vld [vmem:[#allocation5 + $0x54] sm:$0xf]
    %v62 = vld [vmem:[#allocation5 + $0x58] sm:$0xf]
    %v63 = vld [vmem:[#allocation5 + $0x5c] sm:$0xf]
    %v64 = vld [vmem:[#allocation5 + $0x60] sm:$0xf]
    %v65 = vld [vmem:[#allocation5 + $0x64] sm:$0xf]
    %v66 = vld [vmem:[#allocation5 + $0x68] sm:$0xf]
    %v67 = vld [vmem:[#allocation5 + $0x6c] sm:$0xf]
    %v68 = vld [vmem:[#allocation5 + $0x70] sm:$0xf]
    %v69 = vld [vmem:[#allocation5 + $0x74] sm:$0xf]
    %v70 = vld [vmem:[#allocation5 + $0x78] sm:$0xf]
    %v71 = vld [vmem:[#allocation5 + $0x7c] sm:$0xf]
    %v72 = vunpack.c.l.bf16 %v40
    %v73 = vunpack.c.l.bf16 %v41
    %v74 = vunpack.c.l.bf16 %v42
    %v75 = vunpack.c.l.bf16 %v43
    %v76 = vunpack.c.l.bf16 %v44
    %v77 = vunpack.c.l.bf16 %v45
    %v78 = vunpack.c.l.bf16 %v46
    %v79 = vunpack.c.l.bf16 %v47
    %v80 = vunpack.c.l.bf16 %v48
    %v81 = vunpack.c.l.bf16 %v49
    %v82 = vunpack.c.l.bf16 %v50
    %v83 = vunpack.c.l.bf16 %v51
    %v84 = vunpack.c.l.bf16 %v52
    %v85 = vunpack.c.l.bf16 %v53
    %v86 = vunpack.c.l.bf16 %v54
    %v87 = vunpack.c.l.bf16 %v55
    %v88 = vunpack.c.l.bf16 %v56
    %v89 = vunpack.c.l.bf16 %v57
    %v90 = vunpack.c.l.bf16 %v58
    %v91 = vunpack.c.l.bf16 %v59
    %v92 = vunpack.c.l.bf16 %v60
    %v93 = vunpack.c.l.bf16 %v61
    %v94 = vunpack.c.l.bf16 %v62
    %v95 = vunpack.c.l.bf16 %v63
    %v96 = vunpack.c.l.bf16 %v64
    %v97 = vunpack.c.l.bf16 %v65
    %v98 = vunpack.c.l.bf16 %v66
    %v99 = vunpack.c.l.bf16 %v67
    %v100 = vunpack.c.l.bf16 %v68
    %v101 = vunpack.c.l.bf16 %v69
    %v102 = vunpack.c.l.bf16 %v70
    %v103 = vunpack.c.l.bf16 %v71
    %104 = vmatprep.subr.mxu0 0.0
    %105 = vmatpush1.msra.mxu0 %v87
    %106 = vmatprep.subr.mxu0 0.0
    %107 = vmatpush1.msra.mxu0 %v86
    %108 = vmatprep.subr.mxu0 0.0
    %109 = vmatpush1.msra.mxu0 %v85
    %110 = vmatprep.subr.mxu0 0.0
    %111 = vmatpush1.msra.mxu0 %v84
    %112 = vmatprep.subr.mxu0 0.0
    %113 = vmatpush1.msra.mxu0 %v83
    %114 = vmatprep.subr.mxu0 0.0
    %115 = vmatpush1.msra.mxu0 %v82
    %116 = vmatprep.subr.mxu0 0.0
    %117 = vmatpush1.msra.mxu0 %v81
    %118 = vmatprep.subr.mxu0 0.0
    %119 = vmatpush1.msra.mxu0 %v80
    %120 = vmatprep.subr.mxu0 0.0
    %121 = vmatpush1.msra.mxu0 %v79
    %122 = vmatprep.subr.mxu0 0.0
    %123 = vmatpush1.msra.mxu0 %v78
    %124 = vmatprep.subr.mxu0 0.0
    %125 = vmatpush1.msra.mxu0 %v77
    %126 = vmatprep.subr.mxu0 0.0
    %127 = vmatpush1.msra.mxu0 %v76
    %128 = vmatprep.subr.mxu0 0.0
    %129 = vmatpush1.msra.mxu0 %v75
    %130 = vmatprep.subr.mxu0 0.0
    %131 = vmatpush1.msra.mxu0 %v74
    %132 = vmatprep.subr.mxu0 0.0
    %133 = vmatpush1.msra.mxu0 %v73
    %134 = vmatprep.subr.mxu0 0.0
    %135 = vmatpush1.msra.mxu0 %v72
    %136 = vmatprep.subr.mxu0 0.0
    %137 = vmatpush2.msra.mxu0 %v103
    %138 = vmatprep.subr.mxu0 0.0
    %139 = vmatpush2.msra.mxu0 %v102
    %140 = vmatprep.subr.mxu0 0.0
    %141 = vmatpush2.msra.mxu0 %v101
    %142 = vmatprep.subr.mxu0 0.0
    %143 = vmatpush2.msra.mxu0 %v100
    %144 = vmatprep.subr.mxu0 0.0
    %145 = vmatpush2.msra.mxu0 %v99
    %146 = vmatprep.subr.mxu0 0.0
    %147 = vmatpush2.msra.mxu0 %v98
    %148 = vmatprep.subr.mxu0 0.0
    %149 = vmatpush2.msra.mxu0 %v97
    %150 = vmatprep.subr.mxu0 0.0
    %151 = vmatpush2.msra.mxu0 %v96
    %152 = vmatprep.subr.mxu0 0.0
    %153 = vmatpush2.msra.mxu0 %v95
    %154 = vmatprep.subr.mxu0 0.0
    %155 = vmatpush2.msra.mxu0 %v94
    %156 = vmatprep.subr.mxu0 0.0
    %157 = vmatpush2.msra.mxu0 %v93
    %158 = vmatprep.subr.mxu0 0.0
    %159 = vmatpush2.msra.mxu0 %v92
    %160 = vmatprep.subr.mxu0 0.0
    %161 = vmatpush2.msra.mxu0 %v91
    %162 = vmatprep.subr.mxu0 0.0
    %163 = vmatpush2.msra.mxu0 %v90
    %164 = vmatprep.subr.mxu0 0.0
    %165 = vmatpush2.msra.mxu0 %v89
    %166 = vmatprep.subr.mxu0 0.0
    %167 = vmatpush2.msra.mxu0 %v88
    %168 = vmatprep.mubr.f32.mxu0 %v39
    %169 = vmatmul.mubr.f32.gmra.mxu0 %v38
    %v170 = vpop.f32.mrf.mxu0
    %v171 = vadd.f32 0.0, %v170
    %v172 = vpop.f32.mrf.mxu0
    %173 = vdwg.mxu0
    %174 = vst [vmem:[#allocation7] sm:$0xff] %v171
    // Predicated region
    $region18: #{tpu_custom_call.1} parent=1 // pred_check
      _
    $region19: #{tpu_custom_call.1} parent=1 // pred_check_branch
      %176 = sbr.rel (0) target = $region21
    $region20: #{tpu_custom_call.1} parent=1 // pred_region
      %s178 = ssub.s32 128, 128
      %179 = vsyncadd [#allocation4], %s178
      %s181 = sshll.u32 [#allocation7], 4
      %s182 = int_to_ptr.vmem [resolvable:$true] %s181
      %184 = dma.vmem_to_hbm [thread:$0]  %s182, 128, %s2, [#allocation4]
    $region21: #{tpu_custom_call.1} parent=1 // pred_fallthru
      _
    // Predicated region
    $region22: #{tpu_custom_call.1} parent=1 // pred_check
      _
    $region23: #{tpu_custom_call.1} parent=1 // pred_check_branch
      %186 = sbr.rel (0) target = $region25
    $region24: #{tpu_custom_call.1} parent=1 // pred_region
      %187 = dma.done [#allocation4], 128
    $region25: #{tpu_custom_call.1} parent=1 // pred_fallthru
      _
    %188 = vsyncpa [#allocation3], 1
    %189 = vsyncpa [#allocation6], 1
    %190 = vsyncpa [#allocation4], 1

</llo_original>
